<compile_context>
chip_gen: v7x
topology: tpu7x:2x2x1
jax: 0.10.0
libtpu: 0.0.40
codegen_flags: <defaults>
</compile_context>

<pallas_src>
import jax
import jax.numpy as jnp
from jax.experimental import pallas as pl
from jax.experimental.pallas import tpu as pltpu

KERNEL_SIZES = (2, 3, 4)


def _round_up(x, m):
    return (x + m - 1) // m * m


def _make_kernel(*, seq_len, emb_size, k_max, kernels_number, c_pad, kernel_sizes):
    S, E, K = seq_len, emb_size, kernels_number

    def kernel(emb_ref, w_ref, b_ref, fcw_ref, fcb_ref, out_ref):
        TB = emb_ref.shape[0]
        emb = emb_ref[...]                                   # (TB, S_pad, E) bf16
        # im2col: x[b*S + t, dk*E + e] = emb[b, t + dk, e]  (emb is zero-padded
        # along S so every tap window is in-bounds).
        x = jnp.concatenate(
            [emb[:, dk:dk + S, :] for dk in range(k_max)], axis=-1
        ).reshape(TB * S, k_max * E)
        # Fused conv for all branches: one wide MXU matmul, f32 accumulation.
        acc = jnp.dot(x, w_ref[...], preferred_element_type=jnp.float32)
        acc = jnp.maximum(acc + b_ref[...], 0.0)             # bias + ReLU (f32)
        acc = acc.reshape(TB, S, c_pad)

        # Per-branch valid-length mask: branch with kernel size k is only valid
        # for positions t < S - k + 1; masked-to-0 is safe post-ReLU.
        pos = jax.lax.broadcasted_iota(jnp.int32, (S, c_pad), 0)
        chan = jax.lax.broadcasted_iota(jnp.int32, (S, c_pad), 1)
        limit = jnp.zeros((S, c_pad), jnp.int32)
        for i, k in enumerate(kernel_sizes):
            lk = S - k + 1
            limit = jnp.where((chan >= i * K) & (chan < (i + 1) * K), lk, limit)
        acc = jnp.where((pos < limit)[None], acc, 0.0)

        pooled = jnp.max(acc, axis=1)                        # (TB, c_pad) f32
        # TODO(synk): training-mode dropout (p=0.3) not implemented (eval = identity).
        out = jnp.dot(pooled.astype(jnp.bfloat16), fcw_ref[...],
                      preferred_element_type=jnp.float32) + fcb_ref[...]
        out_ref[...] = out.astype(out_ref.dtype)

    return kernel


def cnn_forward(text, params, *, batch_tile=8):
    """text: (seq_len, batch) int32 token ids -> (batch, output_size) float32."""
    k_max = max(KERNEL_SIZES)
    text_bs = text.T                                         # text.permute(1, 0) -> (B, S)
    B, S = text_bs.shape
    assert S >= k_max, "sequence shorter than the widest conv kernel"

    emb_table = params["embedding"]
    E = emb_table.shape[1]
    K = params[f"conv{KERNEL_SIZES[0]}_w"].shape[0]
    C = len(KERNEL_SIZES) * K
    out_size = params["fc_b"].shape[-1]

    C_PAD = _round_up(C, 128)         # lane-dense fused conv-output channels
    OUT_PAD = _round_up(out_size, 128)  # lane-dense final output
    TB = batch_tile                     # batch tile (multiple of 8); raise for big B,
    B_pad = _round_up(B, TB)            # keeping 2*TB*S_pad*E*2B well under VMEM (v7x: 64 MiB).
    S_pad = S + k_max - 1               # zero rows so padded taps never read OOB

    # Embedding gather stays in plain JAX (glue); activation is bf16 for the MXU.
    # TODO(synk): fuse the gather into the kernel via scalar-prefetched token ids.
    ids = jnp.pad(text_bs, ((0, B_pad - B), (0, 0)))
    emb = jnp.take(emb_table.astype(jnp.bfloat16), ids, axis=0)      # (B_pad, S, E)
    emb = jnp.pad(emb, ((0, 0), (0, k_max - 1), (0, 0)))             # (B_pad, S_pad, E)

    # Fused conv weight: W_all[dk*E + e, i*K + o] (taps zero-padded to k_max,
    # channels of the three branches contiguous, zero-padded to C_PAD).
    w_parts, b_parts = [], []
    for k in KERNEL_SIZES:
        w = jnp.transpose(params[f"conv{k}_w"][:, 0], (1, 2, 0))     # (k, E, K)
        w_parts.append(jnp.pad(w, ((0, k_max - k), (0, 0), (0, 0)))) # (k_max, E, K)
        b_parts.append(params[f"conv{k}_b"])
    w_all = jnp.concatenate(w_parts, axis=-1).reshape(k_max * E, C)
    w_all = jnp.pad(w_all, ((0, 0), (0, C_PAD - C))).astype(jnp.bfloat16)
    b_all = jnp.pad(jnp.concatenate(b_parts), (0, C_PAD - C))
    b_all = b_all.reshape(1, C_PAD).astype(jnp.float32)

    fc_w = jnp.pad(params["fc_w"].T,                                  # (3K, out) -> padded
                   ((0, C_PAD - C), (0, OUT_PAD - out_size))).astype(jnp.bfloat16)
    fc_b = jnp.pad(params["fc_b"], (0, OUT_PAD - out_size))
    fc_b = fc_b.reshape(1, OUT_PAD).astype(jnp.float32)

    kernel = _make_kernel(seq_len=S, emb_size=E, k_max=k_max, kernels_number=K,
                          c_pad=C_PAD, kernel_sizes=KERNEL_SIZES)

    out_pad = pl.pallas_call(
        kernel,
        out_shape=jax.ShapeDtypeStruct((B_pad, OUT_PAD), jnp.float32),
        grid=(B_pad // TB,),
        in_specs=[
            pl.BlockSpec((TB, S_pad, E), lambda i: (i, 0, 0)),        # batch-tiled activation
            pl.BlockSpec((k_max * E, C_PAD), lambda i: (0, 0)),       # VMEM-resident weights
            pl.BlockSpec((1, C_PAD), lambda i: (0, 0)),
            pl.BlockSpec((C_PAD, OUT_PAD), lambda i: (0, 0)),
            pl.BlockSpec((1, OUT_PAD), lambda i: (0, 0)),
        ],
        out_specs=pl.BlockSpec((TB, OUT_PAD), lambda i: (i, 0)),      # lane-dense output
        compiler_params=pltpu.CompilerParams(
            dimension_semantics=("parallel",)),
    )(emb, w_all, b_all, fc_w, fc_b)

    return out_pad[:B, :out_size]


def init_params(key, vocab_size, emb_size, kernels_number, kernel_sizes, output_size):
    n = len(kernel_sizes)
    keys = jax.random.split(key, 2 * n + 3)
    params = {"embedding": jax.random.normal(keys[0], (vocab_size, emb_size), jnp.float32)}
    for i, k in enumerate(kernel_sizes):
        params[f"conv{k}_w"] = 0.1 * jax.random.normal(
            keys[1 + 2 * i], (kernels_number, 1, k, emb_size), jnp.float32)
        params[f"conv{k}_b"] = 0.1 * jax.random.normal(
            keys[2 + 2 * i], (kernels_number,), jnp.float32)
    params["fc_w"] = 0.1 * jax.random.normal(
        keys[2 * n + 1], (output_size, n * kernels_number), jnp.float32)
    params["fc_b"] = 0.1 * jax.random.normal(
        keys[2 * n + 2], (output_size,), jnp.float32)
    return params


if __name__ == "__main__":
    vocab_size = 50
    emb_size = 32          # embedding_size (scaled down)
    kernels_number = 16    # out_channels per conv (scaled down)
    output_size = 4        # len(LABEL.vocab) stand-in
    seq_len, batch = 8, 2

    key = jax.random.PRNGKey(0)
    k_params, k_text = jax.random.split(key)
    params = init_params(k_params, vocab_size, emb_size, kernels_number,
                         KERNEL_SIZES, output_size)
    text = jax.random.randint(k_text, (seq_len, batch), 0, vocab_size, dtype=jnp.int32)

    out = cnn_forward(text, params)
    jax.block_until_ready(out)
    assert out.shape == (batch, output_size)
    print("KERNEL_OK")
</pallas_src>

<mosaic_0001>
module attributes {stable_mosaic.version = 11 : i64} {
  func.func @kernel(%arg0: i32, %arg1: memref<8x11x32xbf16, #tpu.memory_space<vmem>>, %arg2: memref<128x128xbf16, #tpu.memory_space<vmem>>, %arg3: memref<1x128xf32, #tpu.memory_space<vmem>>, %arg4: memref<128x128xbf16, #tpu.memory_space<vmem>>, %arg5: memref<1x128xf32, #tpu.memory_space<vmem>>, %arg6: memref<8x128xf32, #tpu.memory_space<vmem>>) attributes {dimension_semantics = [#tpu.dimension_semantics<parallel>], iteration_bounds = array<i64: 1>, scalar_prefetch = 0 : i64, scratch_operands = 0 : i64, tpu.core_type = #tpu.core_type<tc>, window_params = [{transform_indices = @transform_0, window_bounds = array<i64: 8, 11, 32>}, {pipeline_mode = #tpu.pipeline_mode<synchronous>, transform_indices = @transform_1, window_bounds = array<i64: 128, 128>}, {pipeline_mode = #tpu.pipeline_mode<synchronous>, transform_indices = @transform_2, window_bounds = array<i64: 1, 128>}, {pipeline_mode = #tpu.pipeline_mode<synchronous>, transform_indices = @transform_3, window_bounds = array<i64: 128, 128>}, {pipeline_mode = #tpu.pipeline_mode<synchronous>, transform_indices = @transform_4, window_bounds = array<i64: 1, 128>}, {transform_indices = @transform_5, window_bounds = array<i64: 8, 128>}]} {
    %c0 = arith.constant 0 : index
    %c0_0 = arith.constant 0 : index
    %c0_1 = arith.constant 0 : index
    %0 = vector.load %arg1[%c0, %c0_0, %c0_1] : memref<8x11x32xbf16, #tpu.memory_space<vmem>>, vector<8x11x32xbf16>
    %1 = vector.extract_strided_slice %0 {offsets = [0, 0, 0], sizes = [8, 8, 32], strides = [1, 1, 1]} : vector<8x11x32xbf16> to vector<8x8x32xbf16>
    %2 = vector.extract_strided_slice %0 {offsets = [0, 1, 0], sizes = [8, 8, 32], strides = [1, 1, 1]} : vector<8x11x32xbf16> to vector<8x8x32xbf16>
    %3 = vector.extract_strided_slice %0 {offsets = [0, 2, 0], sizes = [8, 8, 32], strides = [1, 1, 1]} : vector<8x11x32xbf16> to vector<8x8x32xbf16>
    %4 = vector.extract_strided_slice %0 {offsets = [0, 3, 0], sizes = [8, 8, 32], strides = [1, 1, 1]} : vector<8x11x32xbf16> to vector<8x8x32xbf16>
    %5 = tpu.concatenate %1, %2, %3, %4 in 2 : vector<8x8x32xbf16>, vector<8x8x32xbf16>, vector<8x8x32xbf16>, vector<8x8x32xbf16> -> vector<8x8x128xbf16>
    %6 = vector.shape_cast %5 : vector<8x8x128xbf16> to vector<64x128xbf16>
    %c0_2 = arith.constant 0 : index
    %c0_3 = arith.constant 0 : index
    %7 = vector.load %arg2[%c0_2, %c0_3] : memref<128x128xbf16, #tpu.memory_space<vmem>>, vector<128x128xbf16>
    %cst = arith.constant dense<0.000000e+00> : vector<64x128xf32>
    %8 = tpu.matmul %6, %7, %cst {dimension_numbers = #tpu.dot_dimension_numbers<[1], [0], [0], [1], [0, 0, 1, 1], [], []>} : vector<64x128xbf16>, vector<128x128xbf16>, vector<64x128xf32> -> vector<64x128xf32>
    %c0_4 = arith.constant 0 : index
    %c0_5 = arith.constant 0 : index
    %9 = vector.load %arg3[%c0_4, %c0_5] : memref<1x128xf32, #tpu.memory_space<vmem>>, vector<1x128xf32>
    %10 = vector.broadcast %9 : vector<1x128xf32> to vector<64x128xf32>
    %11 = arith.addf %8, %10 : vector<64x128xf32>
    %cst_6 = arith.constant 0.000000e+00 : f32
    %12 = vector.broadcast %cst_6 : f32 to vector<64x128xf32>
    %13 = arith.maximumf %11, %12 : vector<64x128xf32>
    %14 = vector.shape_cast %13 : vector<64x128xf32> to vector<8x8x128xf32>
    %15 = tpu.iota {dimensions = array<i32: 0>} : vector<8x128xi32>
    %16 = tpu.iota {dimensions = array<i32: 1>} : vector<8x128xi32>
    %c0_i32 = arith.constant 0 : i32
    %17 = vector.broadcast %c0_i32 : i32 to vector<8x128xi32>
    %c0_i32_7 = arith.constant 0 : i32
    %18 = vector.broadcast %c0_i32_7 : i32 to vector<8x128xi32>
    %19 = arith.cmpi sge, %16, %18 : vector<8x128xi32>
    %c16_i32 = arith.constant 16 : i32
    %20 = vector.broadcast %c16_i32 : i32 to vector<8x128xi32>
    %21 = arith.cmpi slt, %16, %20 : vector<8x128xi32>
    %22 = arith.andi %19, %21 : vector<8x128xi1>
    %c7_i32 = arith.constant 7 : i32
    %23 = vector.broadcast %c7_i32 : i32 to vector<8x128xi32>
    %24 = arith.select %22, %23, %17 : vector<8x128xi1>, vector<8x128xi32>
    %c16_i32_8 = arith.constant 16 : i32
    %25 = vector.broadcast %c16_i32_8 : i32 to vector<8x128xi32>
    %26 = arith.cmpi sge, %16, %25 : vector<8x128xi32>
    %c32_i32 = arith.constant 32 : i32
    %27 = vector.broadcast %c32_i32 : i32 to vector<8x128xi32>
    %28 = arith.cmpi slt, %16, %27 : vector<8x128xi32>
    %29 = arith.andi %26, %28 : vector<8x128xi1>
    %c6_i32 = arith.constant 6 : i32
    %30 = vector.broadcast %c6_i32 : i32 to vector<8x128xi32>
    %31 = arith.select %29, %30, %24 : vector<8x128xi1>, vector<8x128xi32>
    %c32_i32_9 = arith.constant 32 : i32
    %32 = vector.broadcast %c32_i32_9 : i32 to vector<8x128xi32>
    %33 = arith.cmpi sge, %16, %32 : vector<8x128xi32>
    %c48_i32 = arith.constant 48 : i32
    %34 = vector.broadcast %c48_i32 : i32 to vector<8x128xi32>
    %35 = arith.cmpi slt, %16, %34 : vector<8x128xi32>
    %36 = arith.andi %33, %35 : vector<8x128xi1>
    %c5_i32 = arith.constant 5 : i32
    %37 = vector.broadcast %c5_i32 : i32 to vector<8x128xi32>
    %38 = arith.select %36, %37, %31 : vector<8x128xi1>, vector<8x128xi32>
    %39 = arith.cmpi slt, %15, %38 : vector<8x128xi32>
    %40 = vector.shape_cast %39 : vector<8x128xi1> to vector<1x8x128xi1>
    %cst_10 = arith.constant 0.000000e+00 : f32
    %41 = vector.shape_cast %40 : vector<1x8x128xi1> to vector<1x8x128xi1>
    %42 = vector.broadcast %41 : vector<1x8x128xi1> to vector<8x8x128xi1>
    %43 = vector.broadcast %cst_10 : f32 to vector<8x8x128xf32>
    %44 = arith.select %42, %14, %43 : vector<8x8x128xi1>, vector<8x8x128xf32>
    %cst_11 = arith.constant dense<0xFF800000> : vector<8x128xf32>
    %45 = vector.multi_reduction <maximumf>, %44, %cst_11 [1] : vector<8x8x128xf32> to vector<8x128xf32>
    %46 = arith.truncf %45 : vector<8x128xf32> to vector<8x128xbf16>
    %c0_12 = arith.constant 0 : index
    %c0_13 = arith.constant 0 : index
    %47 = vector.load %arg4[%c0_12, %c0_13] : memref<128x128xbf16, #tpu.memory_space<vmem>>, vector<128x128xbf16>
    %cst_14 = arith.constant dense<0.000000e+00> : vector<8x128xf32>
    %48 = tpu.matmul %46, %47, %cst_14 {dimension_numbers = #tpu.dot_dimension_numbers<[1], [0], [0], [1], [0, 0, 1, 1], [], []>} : vector<8x128xbf16>, vector<128x128xbf16>, vector<8x128xf32> -> vector<8x128xf32>
    %c0_15 = arith.constant 0 : index
    %c0_16 = arith.constant 0 : index
    %49 = vector.load %arg5[%c0_15, %c0_16] : memref<1x128xf32, #tpu.memory_space<vmem>>, vector<1x128xf32>
    %50 = vector.broadcast %49 : vector<1x128xf32> to vector<8x128xf32>
    %51 = arith.addf %48, %50 : vector<8x128xf32>
    %c0_17 = arith.constant 0 : index
    %c0_18 = arith.constant 0 : index
    %52 = vector.load %arg6[%c0_17, %c0_18] : memref<8x128xf32, #tpu.memory_space<vmem>>, vector<8x128xf32>
    tpu.vector_store %arg6[%c0_17, %c0_18], %51 {strides = array<i32>} : memref<8x128xf32, #tpu.memory_space<vmem>>, vector<8x128xf32>,
    return
  }
  func.func @transform_0(%arg0: i32) -> (i32, i32, i32) {
    %c0_i32 = arith.constant 0 : i32
    %c0_i32_0 = arith.constant 0 : i32
    %c0_i32_1 = arith.constant 0 : i32
    return %arg0, %c0_i32, %c0_i32_0 : i32, i32, i32
  }
  func.func @transform_1(%arg0: i32) -> (i32, i32) {
    %c0_i32 = arith.constant 0 : i32
    %c0_i32_0 = arith.constant 0 : i32
    %c0_i32_1 = arith.constant 0 : i32
    return %c0_i32, %c0_i32_0 : i32, i32
  }
  func.func @transform_2(%arg0: i32) -> (i32, i32) {
    %c0_i32 = arith.constant 0 : i32
    %c0_i32_0 = arith.constant 0 : i32
    %c0_i32_1 = arith.constant 0 : i32
    return %c0_i32, %c0_i32_0 : i32, i32
  }
  func.func @transform_3(%arg0: i32) -> (i32, i32) {
    %c0_i32 = arith.constant 0 : i32
    %c0_i32_0 = arith.constant 0 : i32
    %c0_i32_1 = arith.constant 0 : i32
    return %c0_i32, %c0_i32_0 : i32, i32
  }
  func.func @transform_4(%arg0: i32) -> (i32, i32) {
    %c0_i32 = arith.constant 0 : i32
    %c0_i32_0 = arith.constant 0 : i32
    %c0_i32_1 = arith.constant 0 : i32
    return %c0_i32, %c0_i32_0 : i32, i32
  }
  func.func @transform_5(%arg0: i32) -> (i32, i32) {
    %c0_i32 = arith.constant 0 : i32
    %c0_i32_0 = arith.constant 0 : i32
    return %arg0, %c0_i32 : i32, i32
  }
}

</mosaic_0001>

<llo_original>
// kernel: tpu_custom_call.1
$region0: #{tpu_custom_call.1}
  #allocation0 [shape = 'u32[]', space=smem, size = 0x4, offset = 0x4, fixed_abs, tag = 'smem constant byte address 0x4 - core index']
  #allocation1 [shape = 'u32[144,128]{1,0:T(1,128)}', space=vmem, size = 0x12000, scoped, tag = 'internal scratch']
  %s0 = inlined_call_operand.vmem [shape: bf16[8,11,32], index: 0, kind: input, shape index: {}]
  %s1 = inlined_call_operand.vmem [shape: bf16[128,128], index: 1, kind: input, shape index: {}]
  %s2 = inlined_call_operand.vmem [shape: f32[1,128], index: 2, kind: input, shape index: {}]
  %s3 = inlined_call_operand.hbm [shape: bf16[128,128], index: 3, kind: input, shape index: {}]
  %s4 = inlined_call_operand.vmem [shape: f32[1,128], index: 4, kind: input, shape index: {}]
  %s5 = inlined_call_operand.hbm [shape: f32[8,128], index: 5, kind: output, shape index: {}]
  %s6 = sld [smem:[#allocation0]]
  $region34: #{tpu_custom_call.1} parent=0
    _
  %s8 = ssub.s32 1, %s6
  %s9 = scalar_select 0, %s8, %s6
  $region1: #{tpu_custom_call.1} parent=0
    #allocation2 [shape = 'u8[32768]{0}', space=vmem, size = 0x8000, scoped, tag = 'input window, operand 3, single buffered']
    #allocation3 [shape = 's32[1]{0}', space=sflag, size = 0x4, scoped, tag = 'scoped memory for tpu_custom_call.1']
    #allocation4 [shape = 's32[1]{0}', space=sflag, size = 0x4, scoped, tag = 'scoped memory for tpu_custom_call.1']
    #allocation5 [shape = 'u8[4096]{0}', space=vmem, size = 0x1000, scoped, tag = 'output window, operand 0, single buffered']
    %10 = vsyncpa [#allocation3], 0
    %11 = vsyncpa [#allocation4], 0
    // Predicated region
    $region2: #{tpu_custom_call.1} parent=1 // pred_check
      _
    $region3: #{tpu_custom_call.1} parent=1 // pred_check_branch
      %13 = sbr.rel (0) target = $region5
    $region4: #{tpu_custom_call.1} parent=1 // pred_region
      _
    $region5: #{tpu_custom_call.1} parent=1 // pred_fallthru
      _
    // Predicated region
    $region6: #{tpu_custom_call.1} parent=1 // pred_check
      _
    $region7: #{tpu_custom_call.1} parent=1 // pred_check_branch
      %15 = sbr.rel (0) target = $region9
    $region8: #{tpu_custom_call.1} parent=1 // pred_region
      _
    $region9: #{tpu_custom_call.1} parent=1 // pred_fallthru
      _
    // Predicated region
    $region10: #{tpu_custom_call.1} parent=1 // pred_check
      _
    $region11: #{tpu_custom_call.1} parent=1 // pred_check_branch
      %17 = sbr.rel (0) target = $region13
    $region12: #{tpu_custom_call.1} parent=1 // pred_region
      _
    $region13: #{tpu_custom_call.1} parent=1 // pred_fallthru
      _
    // Predicated region
    $region14: #{tpu_custom_call.1} parent=1 // pred_check
      _
    $region15: #{tpu_custom_call.1} parent=1 // pred_check_branch
      %19 = sbr.rel (0) target = $region17
    $region16: #{tpu_custom_call.1} parent=1 // pred_region
      %s21 = ssub.s32 1024, 1024
      %22 = vsyncadd [#allocation3], %s21
      %s23 = sshll.u32 [#allocation2], 4
      %s24 = int_to_ptr.vmem [resolvable:$true] %s23
      %29 = dma.hbm_to_vmem [thread:$0]  %s3, 1024, %s24, [#allocation3], 64, 64, 4
    $region17: #{tpu_custom_call.1} parent=1 // pred_fallthru
      _
    // Predicated region
    $region18: #{tpu_custom_call.1} parent=1 // pred_check
      _
    $region19: #{tpu_custom_call.1} parent=1 // pred_check_branch
      %31 = sbr.rel (0) target = $region21
    $region20: #{tpu_custom_call.1} parent=1 // pred_region
      _
    $region21: #{tpu_custom_call.1} parent=1 // pred_fallthru
      _
    // Predicated region
    $region22: #{tpu_custom_call.1} parent=1 // pred_check
      _
    $region23: #{tpu_custom_call.1} parent=1 // pred_check_branch
      %33 = sbr.rel (0) target = $region25
    $region24: #{tpu_custom_call.1} parent=1 // pred_region
      %34 = dma.done [#allocation3], 1024
    $region25: #{tpu_custom_call.1} parent=1 // pred_fallthru
      _
    %v36 = vld [vmem:[%s0] sm:$0xf]
    %v37 = vld [vmem:[%s0 + $0x4] sm:$0x3]
    %v38 = vld [vmem:[%s0 + $0x8] sm:$0xf]
    %v39 = vld [vmem:[%s0 + $0xc] sm:$0x3]
    %v40 = vld [vmem:[%s0 + $0x10] sm:$0xf]
    %v41 = vld [vmem:[%s0 + $0x14] sm:$0x3]
    %v42 = vld [vmem:[%s0 + $0x18] sm:$0xf]
    %v43 = vld [vmem:[%s0 + $0x1c] sm:$0x3]
    %v44 = vld [vmem:[%s0 + $0x20] sm:$0xf]
    %v45 = vld [vmem:[%s0 + $0x24] sm:$0x3]
    %v46 = vld [vmem:[%s0 + $0x28] sm:$0xf]
    %v47 = vld [vmem:[%s0 + $0x2c] sm:$0x3]
    %v48 = vld [vmem:[%s0 + $0x30] sm:$0xf]
    %v49 = vld [vmem:[%s0 + $0x34] sm:$0x3]
    %v50 = vld [vmem:[%s0 + $0x38] sm:$0xf]
    %v51 = vld [vmem:[%s0 + $0x3c] sm:$0x3]
    %v68 = vunpack.c.l.b16 %v36
    %v69 = vunpack.c.l.b16 %v37
    %v70 = vunpack.c.l.b16 %v38
    %v71 = vunpack.c.l.b16 %v39
    %v72 = vunpack.c.l.b16 %v40
    %v73 = vunpack.c.l.b16 %v41
    %v74 = vunpack.c.l.b16 %v42
    %v75 = vunpack.c.l.b16 %v43
    %v76 = vunpack.c.l.b16 %v44
    %v77 = vunpack.c.l.b16 %v45
    %v78 = vunpack.c.l.b16 %v46
    %v79 = vunpack.c.l.b16 %v47
    %v80 = vunpack.c.l.b16 %v48
    %v81 = vunpack.c.l.b16 %v49
    %v82 = vunpack.c.l.b16 %v50
    %v83 = vunpack.c.l.b16 %v51
    %v84 = vpack.c.b16 %v69, %v68
    %v85 = vpack.c.b16 %v71, %v70
    %v86 = vpack.c.b16 %v73, %v72
    %v87 = vpack.c.b16 %v75, %v74
    %v88 = vpack.c.b16 %v77, %v76
    %v89 = vpack.c.b16 %v79, %v78
    %v90 = vpack.c.b16 %v81, %v80
    %v91 = vpack.c.b16 %v83, %v82
    %v93 = vshrl.u32 %v84, 16
    %v95 = vshll.u32 %v84, 16
    %v97 = vrot.slane %v95, 1
    %v98 = vor.u32 %v93, %v97
    %v100 = vshrl.u32 %v85, 16
    %v102 = vshll.u32 %v85, 16
    %v104 = vrot.slane %v102, 1
    %v105 = vor.u32 %v100, %v104
    %v107 = vshrl.u32 %v86, 16
    %v109 = vshll.u32 %v86, 16
    %v111 = vrot.slane %v109, 1
    %v112 = vor.u32 %v107, %v111
    %v114 = vshrl.u32 %v87, 16
    %v116 = vshll.u32 %v87, 16
    %v118 = vrot.slane %v116, 1
    %v119 = vor.u32 %v114, %v118
    %v121 = vshrl.u32 %v88, 16
    %v123 = vshll.u32 %v88, 16
    %v125 = vrot.slane %v123, 1
    %v126 = vor.u32 %v121, %v125
    %v128 = vshrl.u32 %v89, 16
    %v130 = vshll.u32 %v89, 16
    %v132 = vrot.slane %v130, 1
    %v133 = vor.u32 %v128, %v132
    %v135 = vshrl.u32 %v90, 16
    %v137 = vshll.u32 %v90, 16
    %v139 = vrot.slane %v137, 1
    %v140 = vor.u32 %v135, %v139
    %v142 = vshrl.u32 %v91, 16
    %v144 = vshll.u32 %v91, 16
    %v146 = vrot.slane %v144, 1
    %v147 = vor.u32 %v142, %v146
    %148 = vrot.lane.b32.xlu0 %v98, 32
    %v149 = vpop.permute.xlu0 %148
    %150 = vrot.lane.b32.xlu0 %v105, 32
    %v151 = vpop.permute.xlu0 %150
    %152 = vrot.lane.b32.xlu0 %v112, 32
    %v153 = vpop.permute.xlu0 %152
    %154 = vrot.lane.b32.xlu0 %v119, 32
    %v155 = vpop.permute.xlu0 %154
    %156 = vrot.lane.b32.xlu0 %v126, 32
    %v157 = vpop.permute.xlu0 %156
    %158 = vrot.lane.b32.xlu0 %v133, 32
    %v159 = vpop.permute.xlu0 %158
    %160 = vrot.lane.b32.xlu0 %v140, 32
    %v161 = vpop.permute.xlu0 %160
    %162 = vrot.lane.b32.xlu0 %v147, 32
    %v163 = vpop.permute.xlu0 %162
    %v164 = vrot.slane %v84, 1
    %v165 = vrot.slane %v85, 1
    %v166 = vrot.slane %v86, 1
    %v167 = vrot.slane %v87, 1
    %v168 = vrot.slane %v88, 1
    %v169 = vrot.slane %v89, 1
    %v170 = vrot.slane %v90, 1
    %v171 = vrot.slane %v91, 1
    %172 = vrot.lane.b32.xlu0 %v164, 64
    %v173 = vpop.permute.xlu0 %172
    %174 = vrot.lane.b32.xlu0 %v165, 64
    %v175 = vpop.permute.xlu0 %174
    %176 = vrot.lane.b32.xlu0 %v166, 64
    %v177 = vpop.permute.xlu0 %176
    %178 = vrot.lane.b32.xlu0 %v167, 64
    %v179 = vpop.permute.xlu0 %178
    %180 = vrot.lane.b32.xlu0 %v168, 64
    %v181 = vpop.permute.xlu0 %180
    %182 = vrot.lane.b32.xlu0 %v169, 64
    %v183 = vpop.permute.xlu0 %182
    %184 = vrot.lane.b32.xlu0 %v170, 64
    %v185 = vpop.permute.xlu0 %184
    %186 = vrot.lane.b32.xlu0 %v171, 64
    %v187 = vpop.permute.xlu0 %186
    %v188 = vrot.slane %v93, 1
    %v189 = vrot.slane %v95, 2
    %v190 = vor.u32 %v188, %v189
    %v191 = vrot.slane %v100, 1
    %v192 = vrot.slane %v102, 2
    %v193 = vor.u32 %v191, %v192
    %v194 = vrot.slane %v107, 1
    %v195 = vrot.slane %v109, 2
    %v196 = vor.u32 %v194, %v195
    %v197 = vrot.slane %v114, 1
    %v198 = vrot.slane %v116, 2
    %v199 = vor.u32 %v197, %v198
    %v200 = vrot.slane %v121, 1
    %v201 = vrot.slane %v123, 2
    %v202 = vor.u32 %v200, %v201
    %v203 = vrot.slane %v128, 1
    %v204 = vrot.slane %v130, 2
    %v205 = vor.u32 %v203, %v204
    %v206 = vrot.slane %v135, 1
    %v207 = vrot.slane %v137, 2
    %v208 = vor.u32 %v206, %v207
    %v209 = vrot.slane %v142, 1
    %v210 = vrot.slane %v144, 2
    %v211 = vor.u32 %v209, %v210
    %212 = vrot.lane.b32.xlu0 %v190, 96
    %v213 = vpop.permute.xlu0 %212
    %214 = vrot.lane.b32.xlu0 %v193, 96
    %v215 = vpop.permute.xlu0 %214
    %216 = vrot.lane.b32.xlu0 %v196, 96
    %v217 = vpop.permute.xlu0 %216
    %218 = vrot.lane.b32.xlu0 %v199, 96
    %v219 = vpop.permute.xlu0 %218
    %220 = vrot.lane.b32.xlu0 %v202, 96
    %v221 = vpop.permute.xlu0 %220
    %222 = vrot.lane.b32.xlu0 %v205, 96
    %v223 = vpop.permute.xlu0 %222
    %224 = vrot.lane.b32.xlu0 %v208, 96
    %v225 = vpop.permute.xlu0 %224
    %226 = vrot.lane.b32.xlu0 %v211, 96
    %v227 = vpop.permute.xlu0 %226
    %vm228 = vcmask 261120
    %v231 = vsel %vm228, %v36, %v149
    %v234 = vsel %vm228, %v38, %v151
    %v237 = vsel %vm228, %v40, %v153
    %v240 = vsel %vm228, %v42, %v155
    %v243 = vsel %vm228, %v44, %v157
    %v246 = vsel %vm228, %v46, %v159
    %v249 = vsel %vm228, %v48, %v161
    %v252 = vsel %vm228, %v50, %v163
    %vm253 = vcmask 523264
    %v255 = vsel %vm253, %v231, %v173
    %v257 = vsel %vm253, %v234, %v175
    %v259 = vsel %vm253, %v237, %v177
    %v261 = vsel %vm253, %v240, %v179
    %v263 = vsel %vm253, %v243, %v181
    %v265 = vsel %vm253, %v246, %v183
    %v267 = vsel %vm253, %v249, %v185
    %v269 = vsel %vm253, %v252, %v187
    %vm270 = vcmask 785408
    %v272 = vsel %vm270, %v255, %v213
    %v274 = vsel %vm270, %v257, %v215
    %v276 = vsel %vm270, %v259, %v217
    %v278 = vsel %vm270, %v261, %v219
    %v280 = vsel %vm270, %v263, %v221
    %v282 = vsel %vm270, %v265, %v223
    %v284 = vsel %vm270, %v267, %v225
    %v286 = vsel %vm270, %v269, %v227
    %v287 = vld [vmem:[%s1] sm:$0xf]
    %v288 = vld [vmem:[%s1 + $0x4] sm:$0xf]
    %v289 = vld [vmem:[%s1 + $0x8] sm:$0xf]
    %v290 = vld [vmem:[%s1 + $0xc] sm:$0xf]
    %v291 = vld [vmem:[%s1 + $0x10] sm:$0xf]
    %v292 = vld [vmem:[%s1 + $0x14] sm:$0xf]
    %v293 = vld [vmem:[%s1 + $0x18] sm:$0xf]
    %v294 = vld [vmem:[%s1 + $0x1c] sm:$0xf]
    %v295 = vld [vmem:[%s1 + $0x20] sm:$0xf]
    %v296 = vld [vmem:[%s1 + $0x24] sm:$0xf]
    %v297 = vld [vmem:[%s1 + $0x28] sm:$0xf]
    %v298 = vld [vmem:[%s1 + $0x2c] sm:$0xf]
    %v299 = vld [vmem:[%s1 + $0x30] sm:$0xf]
    %v300 = vld [vmem:[%s1 + $0x34] sm:$0xf]
    %v301 = vld [vmem:[%s1 + $0x38] sm:$0xf]
    %v302 = vld [vmem:[%s1 + $0x3c] sm:$0xf]
    %v303 = vld [vmem:[%s2] sm:$0x1]
    %v305 = vlaneseq
    %v306 = vshrl.u32 %v305, 7
    %v307 = vsub.s32 0, %v306
    %v308 = vrot.slane %v303, %v307
    %v318 = vunpack.c.l.b16 %v272
    %v319 = vunpack.c.l.b16 %v274
    %v320 = vunpack.c.l.b16 %v276
    %v321 = vunpack.c.l.b16 %v278
    %v322 = vunpack.c.l.b16 %v280
    %v323 = vunpack.c.l.b16 %v282
    %v324 = vunpack.c.l.b16 %v284
    %v325 = vunpack.c.l.b16 %v286
    %v326 = vpack.c.b16 %v319, %v318
    %v327 = vpack.c.b16 %v321, %v320
    %v328 = vpack.c.b16 %v323, %v322
    %v329 = vpack.c.b16 %v325, %v324
    %v350 = vunpack.c.l.b16 %v287
    %v351 = vunpack.c.l.b16 %v288
    %v352 = vunpack.c.l.b16 %v289
    %v353 = vunpack.c.l.b16 %v290
    %v354 = vunpack.c.l.b16 %v291
    %v355 = vunpack.c.l.b16 %v292
    %v356 = vunpack.c.l.b16 %v293
    %v357 = vunpack.c.l.b16 %v294
    %v358 = vunpack.c.l.b16 %v295
    %v359 = vunpack.c.l.b16 %v296
    %v360 = vunpack.c.l.b16 %v297
    %v361 = vunpack.c.l.b16 %v298
    %v362 = vunpack.c.l.b16 %v299
    %v363 = vunpack.c.l.b16 %v300
    %v364 = vunpack.c.l.b16 %v301
    %v365 = vunpack.c.l.b16 %v302
    %v366 = vpack.c.b16 %v351, %v350
    %v367 = vpack.c.b16 %v353, %v352
    %v368 = vpack.c.b16 %v355, %v354
    %v369 = vpack.c.b16 %v357, %v356
    %v370 = vpack.c.b16 %v359, %v358
    %v371 = vpack.c.b16 %v361, %v360
    %v372 = vpack.c.b16 %v363, %v362
    %v373 = vpack.c.b16 %v365, %v364
    %382 = vmatprep.subr.bf16.mxu0 0
    %383 = vmatpush1.bf16.msra.mxu0 %v366
    %384 = vmatprep.subr.bf16.mxu0 0
    %385 = vmatpush1.bf16.msra.mxu0 %v367
    %386 = vmatprep.subr.bf16.mxu0 0
    %387 = vmatpush1.bf16.msra.mxu0 %v368
    %388 = vmatprep.subr.bf16.mxu0 0
    %389 = vmatpush1.bf16.msra.mxu0 %v369
    %390 = vmatprep.subr.bf16.mxu0 0
    %391 = vmatpush1.bf16.msra.mxu0 %v370
    %392 = vmatprep.subr.bf16.mxu0 0
    %393 = vmatpush1.bf16.msra.mxu0 %v371
    %394 = vmatprep.subr.bf16.mxu0 0
    %395 = vmatpush1.bf16.msra.mxu0 %v372
    %396 = vmatprep.subr.bf16.mxu0 0
    %397 = vmatpush1.bf16.msra.mxu0 %v373
    %398 = vmatprep.subr.bf16.mxu0 0
    %399 = vmatpush1.bf16.msra.mxu0 0
    %400 = vmatprep.subr.bf16.mxu0 0
    %401 = vmatpush1.bf16.msra.mxu0 0
    %402 = vmatprep.subr.bf16.mxu0 0
    %403 = vmatpush1.bf16.msra.mxu0 0
    %404 = vmatprep.subr.bf16.mxu0 0
    %405 = vmatpush1.bf16.msra.mxu0 0
    %406 = vmatprep.subr.bf16.mxu0 0
    %407 = vmatpush1.bf16.msra.mxu0 0
    %408 = vmatprep.subr.bf16.mxu0 0
    %409 = vmatpush1.bf16.msra.mxu0 0
    %410 = vmatprep.subr.bf16.mxu0 0
    %411 = vmatpush1.bf16.msra.mxu0 0
    %412 = vmatprep.subr.bf16.mxu0 0
    %413 = vmatpush1.bf16.msra.mxu0 0
    %414 = vmatprep.mubr.bf16.mxu0 0
    %415 = vmatmul.mubr.bf16.gmra.mrb[0].mxu0 %v326
    %v416 = vpop.f32.mrb[0].mxu0
    %v417 = vadd.f32 %v308, %v416
    %v418 = vpop.f32.mrb[0].mxu0
    %v419 = vpop.f32.mrb[0].mxu0
    %v420 = vadd.f32 %v308, %v419
    %v421 = vpop.f32.mrb[0].mxu0
    %422 = vmatprep.mubr.bf16.mxu0 0
    %423 = vmatmul.mubr.bf16.gmra.mrb[0].mxu0 %v327
    %v424 = vpop.f32.mrb[0].mxu0
    %v425 = vadd.f32 %v308, %v424
    %v426 = vpop.f32.mrb[0].mxu0
    %v427 = vpop.f32.mrb[0].mxu0
    %v428 = vadd.f32 %v308, %v427
    %v429 = vpop.f32.mrb[0].mxu0
    %430 = vmatprep.mubr.bf16.mxu0 0
    %431 = vmatmul.mubr.bf16.gmra.mrb[0].mxu0 %v328
    %v432 = vpop.f32.mrb[0].mxu0
    %v433 = vadd.f32 %v308, %v432
    %v434 = vpop.f32.mrb[0].mxu0
    %v435 = vpop.f32.mrb[0].mxu0
    %v436 = vadd.f32 %v308, %v435
    %v437 = vpop.f32.mrb[0].mxu0
    %438 = vmatprep.mubr.bf16.mxu0 0
    %439 = vmatmul.mubr.bf16.gmra.mrb[0].mxu0 %v329
    %v440 = vpop.f32.mrb[0].mxu0
    %v441 = vadd.f32 %v308, %v440
    %v442 = vpop.f32.mrb[0].mxu0
    %v443 = vpop.f32.mrb[0].mxu0
    %v444 = vadd.f32 %v308, %v443
    %v445 = vpop.f32.mrb[0].mxu0
    %446 = vdwg.mxu0
    %v447 = vmax.f32 %v417, 0.0
    %v448 = vmax.f32 %v420, 0.0
    %v449 = vmax.f32 %v425, 0.0
    %v450 = vmax.f32 %v428, 0.0
    %v451 = vmax.f32 %v433, 0.0
    %v452 = vmax.f32 %v436, 0.0
    %v453 = vmax.f32 %v441, 0.0
    %v454 = vmax.f32 %v444, 0.0
    %v455 = vlaneseq
    %v456 = vshrl.u32 %v455, 7
    %v457 = vlaneseq
    %v458 = vand.u32 %v457, 127
    %vm459 = vcmp.ge.s32.totalorder %v458, 0
    %vm460 = vcmp.lt.s32.totalorder %v458, 16
    %vm461 = vmand %vm459, %vm460
    %v462 = vsel %vm461, 7, 0
    %vm463 = vcmp.ge.s32.totalorder %v458, 16
    %vm464 = vcmp.lt.s32.totalorder %v458, 32
    %vm465 = vmand %vm463, %vm464
    %v466 = vsel %vm465, 6, %v462
    %vm467 = vcmp.ge.s32.totalorder %v458, 32
    %vm468 = vcmp.lt.s32.totalorder %v458, 48
    %vm469 = vmand %vm467, %vm468
    %v470 = vsel %vm469, 5, %v466
    %vm471 = vcmp.lt.s32.totalorder %v456, %v470
    %v472 = vsel %vm471, 1, 0
    %vm473 = vcmp.eq.s32.totalorder %v472, 1
    %v474 = vsel %vm473, %v447, 0.0
    %v475 = vsel %vm473, %v448, 0.0
    %v476 = vsel %vm473, %v449, 0.0
    %v477 = vsel %vm473, %v450, 0.0
    %v478 = vsel %vm473, %v451, 0.0
    %v479 = vsel %vm473, %v452, 0.0
    %v480 = vsel %vm473, %v453, 0.0
    %v481 = vsel %vm473, %v454, 0.0
    %v482 = vrot.slane %v474, 4
    %v483 = vmax.f32 %v474, %v482
    %v484 = vrot.slane %v483, 2
    %v485 = vmax.f32 %v483, %v484
    %v486 = vrot.slane %v485, 1
    %v487 = vmax.f32 %v485, %v486
    %v488 = vrot.slane %v475, 4
    %v489 = vmax.f32 %v475, %v488
    %v490 = vrot.slane %v489, 2
    %v491 = vmax.f32 %v489, %v490
    %v492 = vrot.slane %v491, 1
    %v493 = vmax.f32 %v491, %v492
    %v494 = vrot.slane %v476, 4
    %v495 = vmax.f32 %v476, %v494
    %v496 = vrot.slane %v495, 2
    %v497 = vmax.f32 %v495, %v496
    %v498 = vrot.slane %v497, 1
    %v499 = vmax.f32 %v497, %v498
    %v500 = vrot.slane %v477, 4
    %v501 = vmax.f32 %v477, %v500
    %v502 = vrot.slane %v501, 2
    %v503 = vmax.f32 %v501, %v502
    %v504 = vrot.slane %v503, 1
    %v505 = vmax.f32 %v503, %v504
    %v506 = vrot.slane %v478, 4
    %v507 = vmax.f32 %v478, %v506
    %v508 = vrot.slane %v507, 2
    %v509 = vmax.f32 %v507, %v508
    %v510 = vrot.slane %v509, 1
    %v511 = vmax.f32 %v509, %v510
    %v512 = vrot.slane %v479, 4
    %v513 = vmax.f32 %v479, %v512
    %v514 = vrot.slane %v513, 2
    %v515 = vmax.f32 %v513, %v514
    %v516 = vrot.slane %v515, 1
    %v517 = vmax.f32 %v515, %v516
    %v518 = vrot.slane %v480, 4
    %v519 = vmax.f32 %v480, %v518
    %v520 = vrot.slane %v519, 2
    %v521 = vmax.f32 %v519, %v520
    %v522 = vrot.slane %v521, 1
    %v523 = vmax.f32 %v521, %v522
    %v524 = vrot.slane %v481, 4
    %v525 = vmax.f32 %v481, %v524
    %v526 = vrot.slane %v525, 2
    %v527 = vmax.f32 %v525, %v526
    %v528 = vrot.slane %v527, 1
    %v529 = vmax.f32 %v527, %v528
    %v530 = vpack.c.bf16 %v487, %v487
    %v531 = vpack.c.bf16 %v493, %v493
    %v532 = vpack.c.bf16 %v499, %v499
    %v533 = vpack.c.bf16 %v505, %v505
    %v534 = vpack.c.bf16 %v511, %v511
    %v535 = vpack.c.bf16 %v517, %v517
    %v536 = vpack.c.bf16 %v523, %v523
    %v537 = vpack.c.bf16 %v529, %v529
    %v538 = vld [vmem:[#allocation2] sm:$0xf]
    %v539 = vld [vmem:[#allocation2 + $0x4] sm:$0xf]
    %v540 = vld [vmem:[#allocation2 + $0x8] sm:$0xf]
    %v541 = vld [vmem:[#allocation2 + $0xc] sm:$0xf]
    %v542 = vld [vmem:[#allocation2 + $0x10] sm:$0xf]
    %v543 = vld [vmem:[#allocation2 + $0x14] sm:$0xf]
    %v544 = vld [vmem:[#allocation2 + $0x18] sm:$0xf]
    %v545 = vld [vmem:[#allocation2 + $0x1c] sm:$0xf]
    %v546 = vld [vmem:[#allocation2 + $0x20] sm:$0xf]
    %v547 = vld [vmem:[#allocation2 + $0x24] sm:$0xf]
    %v548 = vld [vmem:[#allocation2 + $0x28] sm:$0xf]
    %v549 = vld [vmem:[#allocation2 + $0x2c] sm:$0xf]
    %v550 = vld [vmem:[#allocation2 + $0x30] sm:$0xf]
    %v551 = vld [vmem:[#allocation2 + $0x34] sm:$0xf]
    %v552 = vld [vmem:[#allocation2 + $0x38] sm:$0xf]
    %v553 = vld [vmem:[#allocation2 + $0x3c] sm:$0xf]
    %v554 = vld [vmem:[%s4] sm:$0x1]
    %v556 = vlaneseq
    %v557 = vshrl.u32 %v556, 7
    %v558 = vsub.s32 0, %v557
    %v559 = vrot.slane %v554, %v558
    %v569 = vunpack.c.l.b16 %v530
    %v570 = vunpack.c.l.b16 %v531
    %v571 = vunpack.c.l.b16 %v532
    %v572 = vunpack.c.l.b16 %v533
    %v573 = vunpack.c.l.b16 %v534
    %v574 = vunpack.c.l.b16 %v535
    %v575 = vunpack.c.l.b16 %v536
    %v576 = vunpack.c.l.b16 %v537
    %vm577 = vcmask 1041409
    %v578 = vsel %vm577, %v570, %v569
    %vm579 = vcmask 1042434
    %v580 = vsel %vm579, %v571, %v578
    %vm581 = vcmask 1043459
    %v582 = vsel %vm581, %v572, %v580
    %vm583 = vcmask 1044484
    %v584 = vsel %vm583, %v573, %v582
    %vm585 = vcmask 1045509
    %v586 = vsel %vm585, %v574, %v584
    %vm587 = vcmask 1046534
    %v588 = vsel %vm587, %v575, %v586
    %vm589 = vcmask 1047559
    %v590 = vsel %vm589, %v576, %v588
    %v591 = vpack.c.b16 %v590, %v590
    %v609 = vunpack.c.l.b16 %v538
    %v610 = vunpack.c.l.b16 %v539
    %v611 = vunpack.c.l.b16 %v540
    %v612 = vunpack.c.l.b16 %v541
    %v613 = vunpack.c.l.b16 %v542
    %v614 = vunpack.c.l.b16 %v543
    %v615 = vunpack.c.l.b16 %v544
    %v616 = vunpack.c.l.b16 %v545
    %v617 = vunpack.c.l.b16 %v546
    %v618 = vunpack.c.l.b16 %v547
    %v619 = vunpack.c.l.b16 %v548
    %v620 = vunpack.c.l.b16 %v549
    %v621 = vunpack.c.l.b16 %v550
    %v622 = vunpack.c.l.b16 %v551
    %v623 = vunpack.c.l.b16 %v552
    %v624 = vunpack.c.l.b16 %v553
    %v625 = vpack.c.b16 %v610, %v609
    %v626 = vpack.c.b16 %v612, %v611
    %v627 = vpack.c.b16 %v614, %v613
    %v628 = vpack.c.b16 %v616, %v615
    %v629 = vpack.c.b16 %v618, %v617
    %v630 = vpack.c.b16 %v620, %v619
    %v631 = vpack.c.b16 %v622, %v621
    %v632 = vpack.c.b16 %v624, %v623
    %641 = vmatprep.subr.bf16.mxu0 0
    %642 = vmatpush1.bf16.msra.mxu0 %v625
    %643 = vmatprep.subr.bf16.mxu0 0
    %644 = vmatpush1.bf16.msra.mxu0 %v626
    %645 = vmatprep.subr.bf16.mxu0 0
    %646 = vmatpush1.bf16.msra.mxu0 %v627
    %647 = vmatprep.subr.bf16.mxu0 0
    %648 = vmatpush1.bf16.msra.mxu0 %v628
    %649 = vmatprep.subr.bf16.mxu0 0
    %650 = vmatpush1.bf16.msra.mxu0 %v629
    %651 = vmatprep.subr.bf16.mxu0 0
    %652 = vmatpush1.bf16.msra.mxu0 %v630
    %653 = vmatprep.subr.bf16.mxu0 0
    %654 = vmatpush1.bf16.msra.mxu0 %v631
    %655 = vmatprep.subr.bf16.mxu0 0
    %656 = vmatpush1.bf16.msra.mxu0 %v632
    %657 = vmatprep.subr.bf16.mxu0 0
    %658 = vmatpush1.bf16.msra.mxu0 0
    %659 = vmatprep.subr.bf16.mxu0 0
    %660 = vmatpush1.bf16.msra.mxu0 0
    %661 = vmatprep.subr.bf16.mxu0 0
    %662 = vmatpush1.bf16.msra.mxu0 0
    %663 = vmatprep.subr.bf16.mxu0 0
    %664 = vmatpush1.bf16.msra.mxu0 0
    %665 = vmatprep.subr.bf16.mxu0 0
    %666 = vmatpush1.bf16.msra.mxu0 0
    %667 = vmatprep.subr.bf16.mxu0 0
    %668 = vmatpush1.bf16.msra.mxu0 0
    %669 = vmatprep.subr.bf16.mxu0 0
    %670 = vmatpush1.bf16.msra.mxu0 0
    %671 = vmatprep.subr.bf16.mxu0 0
    %672 = vmatpush1.bf16.msra.mxu0 0
    %673 = vmatprep.mubr.bf16.mxu0 0
    %674 = vmatmul.mubr.bf16.gmra.mrb[0].mxu0 %v591
    %v675 = vpop.f32.mrb[0].mxu0
    %v676 = vadd.f32 %v559, %v675
    %v677 = vpop.f32.mrb[0].mxu0
    %v678 = vpop.f32.mrb[0].mxu0
    %v679 = vpop.f32.mrb[0].mxu0
    %680 = vdwg.mxu0
    %681 = vst [vmem:[#allocation5] sm:$0xff] %v676
    // Predicated region
    $region26: #{tpu_custom_call.1} parent=1 // pred_check
      _
    $region27: #{tpu_custom_call.1} parent=1 // pred_check_branch
      %683 = sbr.rel (0) target = $region29
    $region28: #{tpu_custom_call.1} parent=1 // pred_region
      %s685 = ssub.s32 128, 128
      %686 = vsyncadd [#allocation4], %s685
      %s688 = sshll.u32 [#allocation5], 4
      %s689 = int_to_ptr.vmem [resolvable:$true] %s688
      %691 = dma.vmem_to_hbm [thread:$0]  %s689, 128, %s5, [#allocation4]
    $region29: #{tpu_custom_call.1} parent=1 // pred_fallthru
      _
    // Predicated region
    $region30: #{tpu_custom_call.1} parent=1 // pred_check
      _
    $region31: #{tpu_custom_call.1} parent=1 // pred_check_branch
      %693 = sbr.rel (0) target = $region33
    $region32: #{tpu_custom_call.1} parent=1 // pred_region
      %694 = dma.done [#allocation4], 128
    $region33: #{tpu_custom_call.1} parent=1 // pred_fallthru
      _
    %695 = vsyncpa [#allocation3], 1
    %696 = vsyncpa [#allocation4], 1

</llo_original>
